<compile_context>
chip_gen: v6e
topology: v6e:2x2x1
jax: 0.10.0
libtpu: 0.0.40
codegen_flags: <defaults>
</compile_context>

<pallas_src>
import functools
from typing import NamedTuple

import jax
import jax.numpy as jnp
from jax import lax
from jax.experimental import pallas as pl
from jax.experimental.pallas import tpu as pltpu

LABEL_SIZE = 10
LATENT_SIZE = 48
CLUSTERING_N = 3
LANE_PAD = 128            # pad label dimension to a full lane width
SMALL_BATCH_THRESHOLD = 64


def _round_up(x, m):
    return ((x + m - 1) // m) * m


def _sign(x):
    # torch: x.ge(0).float() * 2 - 1   (0 maps to +1)
    return jnp.where(x >= 0, 1.0, -1.0).astype(jnp.float32)


# ----------------------------------------------------------------------------
# One-time preparation (depends only on label_latent_vectors) — cached in state
# ----------------------------------------------------------------------------
class HopfieldState(NamedTuple):
    weight: jax.Array        # (D, D), symmetric, zero diagonal
    xT_pad: jax.Array        # (D, LANE_PAD) bf16, cols >= label_size are zero
    label_size: int
    latent_size: int
    clustering_n: int


def hopfield_prepare(label_latent_vectors, pad_labels_to=LANE_PAD,
                     weight_dtype=jnp.float32):
    """Precompute the symmetric zero-diagonal Hopfield weight and the +/-1
    label patterns, pre-transposed and lane-padded, in plain JAX."""
    label_size, latent_size = label_latent_vectors.shape
    # bf16 projection is exact only while |count| <= 256.
    assert latent_size <= 256, "latent_size must be <= 256 for exact bf16 projection"
    # sign(clip(x,-1,1)) == sign(x): clip dropped.
    x = _sign(label_latent_vectors)                                  # (L, D), +/-1
    rho = jnp.mean(x)
    xc = x - rho                                                     # (L, D)
    # weight = xc.T @ xc without an explicit transpose (contract dim 0).
    weight = lax.dot_general(
        xc, xc, (((0,), (0,)), ((), ())), preferred_element_type=jnp.float32
    )                                                                # (D, D)
    weight = weight * (1.0 / label_size)
    weight = weight - jnp.diag(jnp.diag(weight))                     # zero diagonal
    # Pre-transposed, zero-padded patterns: (D, 128) bf16, lane-dense RHS.
    xT_pad = jnp.zeros((latent_size, pad_labels_to), jnp.bfloat16)
    xT_pad = xT_pad.at[:, :label_size].set(x.T.astype(jnp.bfloat16))
    return weight.astype(weight_dtype), xT_pad


def hopfield_init(label_latent_vectors, clustering_n=CLUSTERING_N,
                  weight_dtype=jnp.float32):
    """Build (and cache) the forward state once; reuse across forwards.
    weight_dtype=jnp.bfloat16 enables a faster but approximate iteration —
    validate against the f32 path before using it."""
    weight, xT_pad = hopfield_prepare(label_latent_vectors,
                                      weight_dtype=weight_dtype)
    return HopfieldState(weight=weight, xT_pad=xT_pad,
                         label_size=label_latent_vectors.shape[0],
                         latent_size=label_latent_vectors.shape[1],
                         clustering_n=clustering_n)


# ----------------------------------------------------------------------------
# Pallas kernel
# ----------------------------------------------------------------------------
def hopfield_kernel(weight_ref, xT_ref, s_ref, out_ref, *, clustering_n):
    # weight_ref: (D, D) f32 (or bf16 opt-in), symmetric, zero diagonal, resident
    # xT_ref:     (D, 128) bf16 pre-transposed patterns, resident
    # s_ref:      (block_b, D) f32        out_ref: (block_b, 128) bf16
    weight = weight_ref[...]
    s = s_ref[...]                         # f32; no redundant astype

    # Hopfield iterations: weight symmetric -> s @ weight == s @ weight.T.
    for _ in range(clustering_n):
        lhs = s if s.dtype == weight.dtype else s.astype(weight.dtype)
        s = _sign(jnp.dot(lhs, weight, preferred_element_type=jnp.float32))

    # Projection: (B, D) @ (D, 128) — s and patterns are exactly +/-1 (or 0
    # padding), so the bf16 MXU path is exact; accumulate in f32.
    proj = jnp.dot(s.astype(jnp.bfloat16), xT_ref[...],
                   preferred_element_type=jnp.float32)               # (B, 128)
    # |proj| is an integer count <= latent_size <= 256 -> bf16 store is exact;
    # the 1/latent_size scale is applied outside, on the sliced result.
    out_ref[...] = jnp.abs(proj).astype(out_ref.dtype)


def hopfield_forward_pallas(weight, xT_pad, s, label_size,
                            clustering_n=CLUSTERING_N, block_b=None):
    latent_size = weight.shape[0]
    batch, d = s.shape
    assert d == latent_size
    l_pad = xT_pad.shape[1]

    # ---- batch tile selection ------------------------------------------------
    if block_b is None:
        if batch >= 1024:
            # >= 2 grid steps so the "parallel" axis shards across v7x's 2 TCs,
            # tile capped at 4096 rows (per-tile VMEM stays a few MiB).
            block_b = min(4096, _round_up(pl.cdiv(batch, 2), 8))
        else:
            # single full-extent tile (always legal, no sublane constraint).
            block_b = batch
    else:
        # user-provided: enforce the sublane-divisibility rule.
        block_b = batch if block_b >= batch else _round_up(block_b, 8)

    grid = (pl.cdiv(batch, block_b),)

    kernel = functools.partial(hopfield_kernel, clustering_n=clustering_n)

    cost = pl.CostEstimate(
        flops=batch * (clustering_n * 2 * latent_size * latent_size
                       + 2 * latent_size * l_pad),
        transcendentals=0,
        bytes_accessed=(weight.size * weight.dtype.itemsize
                        + xT_pad.size * xT_pad.dtype.itemsize
                        + batch * latent_size * 4
                        + batch * l_pad * 2),
    )

    out_pad = pl.pallas_call(
        kernel,
        out_shape=jax.ShapeDtypeStruct((batch, l_pad), jnp.bfloat16),
        grid=grid,
        in_specs=[
            pl.BlockSpec((latent_size, latent_size), lambda i: (0, 0)),  # weight, resident
            pl.BlockSpec((latent_size, l_pad), lambda i: (0, 0)),        # patterns^T, resident
            pl.BlockSpec((block_b, latent_size), lambda i: (i, 0)),      # s tile
        ],
        out_specs=pl.BlockSpec((block_b, l_pad), lambda i: (i, 0)),      # lane-dense out
        compiler_params=pltpu.CompilerParams(
            dimension_semantics=("parallel",),
        ),
        cost_estimate=cost,
    )(weight, xT_pad, s)

    # Slice off the lane padding and apply the 1/latent_size scale here
    # (folded out of the kernel; counts are exact integers in bf16).
    return out_pad[:, :label_size].astype(jnp.float32) * (1.0 / latent_size)


# ----------------------------------------------------------------------------
# Small-batch fast path (plain JAX; no pallas_call launch/DMA overhead)
# ----------------------------------------------------------------------------
def _hopfield_forward_jnp(weight, xT_pad, s, label_size, latent_size,
                          clustering_n):
    w = weight.astype(jnp.float32)
    xT = xT_pad[:, :label_size].astype(jnp.float32)   # exact: entries are +/-1
    for _ in range(clustering_n):
        s = _sign(s @ w)
    return jnp.abs(s @ xT) * (1.0 / latent_size)


def hopfield_apply(state: HopfieldState, s, use_pallas=None, block_b=None):
    """Forward matching the PyTorch module, batched over rows of s."""
    batch = s.shape[0]
    if use_pallas is None:
        use_pallas = batch > SMALL_BATCH_THRESHOLD
    if not use_pallas:
        return _hopfield_forward_jnp(state.weight, state.xT_pad, s,
                                     state.label_size, state.latent_size,
                                     state.clustering_n)
    return hopfield_forward_pallas(state.weight, state.xT_pad, s,
                                   state.label_size, state.clustering_n,
                                   block_b=block_b)


# ----------------------------------------------------------------------------
# Pure-JAX reference replicating the torch forward (row-batched)
# ----------------------------------------------------------------------------
def hopfield_reference(label_latent_vectors, s, clustering_n=CLUSTERING_N):
    label_size, latent_size = label_latent_vectors.shape
    x = _sign(jnp.clip(label_latent_vectors, -1.0, 1.0))
    rho = jnp.mean(x)
    xc = x - rho
    weight = xc.T @ xc
    weight = weight - jnp.diag(jnp.diag(weight))
    weight = weight / label_size
    for _ in range(clustering_n):
        s = _sign(s @ weight.T)
    return jnp.abs(s @ x.T / latent_size)


# TODO(synk): Sign straight-through-estimator backward (autograd) not
# implemented — this script covers the forward pass only.

if __name__ == "__main__":
    key = jax.random.PRNGKey(0)
    k1, k2, k3 = jax.random.split(key, 3)

    # label_latent_vector = 2 * rand((label_size, latent_size)) - 1
    llv = 2.0 * jax.random.uniform(
        k1, (LABEL_SIZE, LATENT_SIZE), dtype=jnp.float32) - 1.0

    # Prepare once; reuse across all forwards (prep hoisted out of the call).
    state = hopfield_init(llv)

    # 1) small batch, forced through the Pallas kernel (single full-extent tile)
    batch = 8
    s8 = 2.0 * jax.random.uniform(
        k2, (batch, LATENT_SIZE), dtype=jnp.float32) - 1.0
    out8 = jax.block_until_ready(hopfield_apply(state, s8, use_pallas=True))
    ref8 = hopfield_reference(llv, s8)
    assert out8.shape == (batch, LABEL_SIZE)
    assert jnp.allclose(out8, ref8, atol=1e-5, rtol=1e-5), "pallas batch=8 mismatch"

    # 2) multi-tile + partial last tile: batch=40, block_b=16 -> grid=(3,)
    s40 = 2.0 * jax.random.uniform(
        k3, (40, LATENT_SIZE), dtype=jnp.float32) - 1.0
    out40 = jax.block_until_ready(
        hopfield_apply(state, s40, use_pallas=True, block_b=16))
    ref40 = hopfield_reference(llv, s40)
    assert out40.shape == (40, LABEL_SIZE)
    assert jnp.allclose(out40, ref40, atol=1e-5, rtol=1e-5), "pallas multi-tile mismatch"

    # 3) dispatcher fast path at small batch (plain JAX, no kernel launch)
    out_fast = jax.block_until_ready(hopfield_apply(state, s8))
    assert jnp.allclose(out_fast, ref8, atol=1e-5, rtol=1e-5), "fast-path mismatch"

    print("KERNEL_OK")
</pallas_src>

<mosaic_0001>
module attributes {stable_mosaic.version = 11 : i64} {
  func.func @hopfield_kernel(%arg0: i32, %arg1: memref<48x48xf32, #tpu.memory_space<vmem>>, %arg2: memref<48x128xbf16, #tpu.memory_space<vmem>>, %arg3: memref<8x48xf32, #tpu.memory_space<vmem>>, %arg4: memref<8x128xbf16, #tpu.memory_space<vmem>>) attributes {dimension_semantics = [#tpu.dimension_semantics<parallel>], iteration_bounds = array<i64: 1>, scalar_prefetch = 0 : i64, scratch_operands = 0 : i64, tpu.core_type = #tpu.core_type<tc>, window_params = [{pipeline_mode = #tpu.pipeline_mode<synchronous>, transform_indices = @transform_0, window_bounds = array<i64: 48, 48>}, {pipeline_mode = #tpu.pipeline_mode<synchronous>, transform_indices = @transform_1, window_bounds = array<i64: 48, 128>}, {transform_indices = @transform_2, window_bounds = array<i64: 8, 48>}, {transform_indices = @transform_3, window_bounds = array<i64: 8, 128>}]} {
    %c0 = arith.constant 0 : index
    %c0_0 = arith.constant 0 : index
    %0 = vector.load %arg1[%c0, %c0_0] : memref<48x48xf32, #tpu.memory_space<vmem>>, vector<48x48xf32>
    %c0_1 = arith.constant 0 : index
    %c0_2 = arith.constant 0 : index
    %1 = vector.load %arg3[%c0_1, %c0_2] : memref<8x48xf32, #tpu.memory_space<vmem>>, vector<8x48xf32>
    %cst = arith.constant dense<0.000000e+00> : vector<8x48xf32>
    %2 = tpu.matmul %1, %0, %cst {dimension_numbers = #tpu.dot_dimension_numbers<[1], [0], [0], [1], [0, 0, 1, 1], [], []>} : vector<8x48xf32>, vector<48x48xf32>, vector<8x48xf32> -> vector<8x48xf32>
    %cst_3 = arith.constant 0.000000e+00 : f32
    %3 = vector.broadcast %cst_3 : f32 to vector<8x48xf32>
    %4 = arith.cmpf oge, %2, %3 : vector<8x48xf32>
    %cst_4 = arith.constant 1.000000e+00 : f32
    %cst_5 = arith.constant -1.000000e+00 : f32
    %5 = vector.broadcast %cst_4 : f32 to vector<8x48xf32>
    %6 = vector.broadcast %cst_5 : f32 to vector<8x48xf32>
    %7 = arith.select %4, %5, %6 : vector<8x48xi1>, vector<8x48xf32>
    %cst_6 = arith.constant dense<0.000000e+00> : vector<8x48xf32>
    %8 = tpu.matmul %7, %0, %cst_6 {dimension_numbers = #tpu.dot_dimension_numbers<[1], [0], [0], [1], [0, 0, 1, 1], [], []>} : vector<8x48xf32>, vector<48x48xf32>, vector<8x48xf32> -> vector<8x48xf32>
    %cst_7 = arith.constant 0.000000e+00 : f32
    %9 = vector.broadcast %cst_7 : f32 to vector<8x48xf32>
    %10 = arith.cmpf oge, %8, %9 : vector<8x48xf32>
    %cst_8 = arith.constant 1.000000e+00 : f32
    %cst_9 = arith.constant -1.000000e+00 : f32
    %11 = vector.broadcast %cst_8 : f32 to vector<8x48xf32>
    %12 = vector.broadcast %cst_9 : f32 to vector<8x48xf32>
    %13 = arith.select %10, %11, %12 : vector<8x48xi1>, vector<8x48xf32>
    %cst_10 = arith.constant dense<0.000000e+00> : vector<8x48xf32>
    %14 = tpu.matmul %13, %0, %cst_10 {dimension_numbers = #tpu.dot_dimension_numbers<[1], [0], [0], [1], [0, 0, 1, 1], [], []>} : vector<8x48xf32>, vector<48x48xf32>, vector<8x48xf32> -> vector<8x48xf32>
    %cst_11 = arith.constant 0.000000e+00 : f32
    %15 = vector.broadcast %cst_11 : f32 to vector<8x48xf32>
    %16 = arith.cmpf oge, %14, %15 : vector<8x48xf32>
    %cst_12 = arith.constant 1.000000e+00 : f32
    %cst_13 = arith.constant -1.000000e+00 : f32
    %17 = vector.broadcast %cst_12 : f32 to vector<8x48xf32>
    %18 = vector.broadcast %cst_13 : f32 to vector<8x48xf32>
    %19 = arith.select %16, %17, %18 : vector<8x48xi1>, vector<8x48xf32>
    %20 = arith.truncf %19 : vector<8x48xf32> to vector<8x48xbf16>
    %c0_14 = arith.constant 0 : index
    %c0_15 = arith.constant 0 : index
    %21 = vector.load %arg2[%c0_14, %c0_15] : memref<48x128xbf16, #tpu.memory_space<vmem>>, vector<48x128xbf16>
    %cst_16 = arith.constant dense<0.000000e+00> : vector<8x128xf32>
    %22 = tpu.matmul %20, %21, %cst_16 {dimension_numbers = #tpu.dot_dimension_numbers<[1], [0], [0], [1], [0, 0, 1, 1], [], []>} : vector<8x48xbf16>, vector<48x128xbf16>, vector<8x128xf32> -> vector<8x128xf32>
    %23 = math.absf %22 : vector<8x128xf32>
    %24 = arith.truncf %23 : vector<8x128xf32> to vector<8x128xbf16>
    %c0_17 = arith.constant 0 : index
    %c0_18 = arith.constant 0 : index
    %25 = vector.load %arg4[%c0_17, %c0_18] : memref<8x128xbf16, #tpu.memory_space<vmem>>, vector<8x128xbf16>
    tpu.vector_store %arg4[%c0_17, %c0_18], %24 {strides = array<i32>} : memref<8x128xbf16, #tpu.memory_space<vmem>>, vector<8x128xbf16>,
    return
  }
  func.func @transform_0(%arg0: i32) -> (i32, i32) {
    %c0_i32 = arith.constant 0 : i32
    %c0_i32_0 = arith.constant 0 : i32
    %c0_i32_1 = arith.constant 0 : i32
    return %c0_i32, %c0_i32_0 : i32, i32
  }
  func.func @transform_1(%arg0: i32) -> (i32, i32) {
    %c0_i32 = arith.constant 0 : i32
    %c0_i32_0 = arith.constant 0 : i32
    %c0_i32_1 = arith.constant 0 : i32
    return %c0_i32, %c0_i32_0 : i32, i32
  }
  func.func @transform_2(%arg0: i32) -> (i32, i32) {
    %c0_i32 = arith.constant 0 : i32
    %c0_i32_0 = arith.constant 0 : i32
    return %arg0, %c0_i32 : i32, i32
  }
  func.func @transform_3(%arg0: i32) -> (i32, i32) {
    %c0_i32 = arith.constant 0 : i32
    %c0_i32_0 = arith.constant 0 : i32
    return %arg0, %c0_i32 : i32, i32
  }
}

</mosaic_0001>

<llo_original>
// kernel: tpu_custom_call.1
$region0: #{tpu_custom_call.1}
  #allocation0 [shape = 'u32[]', space=smem, size = 0x4, offset = 0x4, fixed_abs, tag = 'smem constant byte address 0x4 - core index']
  #allocation1 [shape = 'u32[144,128]{1,0:T(1,128)}', space=vmem, size = 0x12000, scoped, tag = 'internal scratch']
  %s0 = inlined_call_operand.hbm [shape: f32[48,48], index: 0, kind: input, shape index: {}]
  %s1 = inlined_call_operand.hbm [shape: bf16[48,128], index: 1, kind: input, shape index: {}]
  %s2 = inlined_call_operand.hbm [shape: f32[8,48], index: 2, kind: input, shape index: {}]
  %s3 = inlined_call_operand.hbm [shape: bf16[8,128], index: 3, kind: output, shape index: {}]
  %s4 = sld [smem:[#allocation0]]
  $region34: #{tpu_custom_call.1} parent=0
    _
  %s6 = ssub.s32 1, %s4
  %s7 = scalar_select 0, %s6, %s4
  $region1: #{tpu_custom_call.1} parent=0
    #allocation2 [shape = 'u8[24576]{0}', space=vmem, size = 0x6000, scoped, tag = 'input window, operand 0, single buffered']
    #allocation3 [shape = 's32[1]{0}', space=sflag, size = 0x4, scoped, tag = 'scoped memory for tpu_custom_call.1']
    #allocation4 [shape = 's32[1]{0}', space=sflag, size = 0x4, scoped, tag = 'scoped memory for tpu_custom_call.1']
    #allocation5 [shape = 'u8[12288]{0}', space=vmem, size = 0x3000, scoped, tag = 'input window, operand 1, single buffered']
    #allocation6 [shape = 's32[1]{0}', space=sflag, size = 0x4, scoped, tag = 'scoped memory for tpu_custom_call.1']
    #allocation7 [shape = 'u8[4096]{0}', space=vmem, size = 0x1000, scoped, tag = 'input window, operand 2, single buffered']
    #allocation8 [shape = 'u8[2048]{0}', space=vmem, size = 0x800, scoped, tag = 'output window, operand 0, single buffered']
    %8 = vsyncpa [#allocation3], 0
    %9 = vsyncpa [#allocation6], 0
    %10 = vsyncpa [#allocation4], 0
    // Predicated region
    $region2: #{tpu_custom_call.1} parent=1 // pred_check
      _
    $region3: #{tpu_custom_call.1} parent=1 // pred_check_branch
      %12 = sbr.rel (0) target = $region5
    $region4: #{tpu_custom_call.1} parent=1 // pred_region
      %s14 = ssub.s32 768, 768
      %15 = vsyncadd [#allocation3], %s14
      %s16 = sshll.u32 [#allocation2], 4
      %s17 = int_to_ptr.vmem [resolvable:$true] %s16
      %22 = dma.hbm_to_vmem [thread:$0]  %s0, 768, %s17, [#allocation3], 128, 128, 8
    $region5: #{tpu_custom_call.1} parent=1 // pred_fallthru
      _
    // Predicated region
    $region6: #{tpu_custom_call.1} parent=1 // pred_check
      _
    $region7: #{tpu_custom_call.1} parent=1 // pred_check_branch
      %24 = sbr.rel (0) target = $region9
    $region8: #{tpu_custom_call.1} parent=1 // pred_region
      %s26 = ssub.s32 384, 384
      %27 = vsyncadd [#allocation6], %s26
      %s28 = sshll.u32 [#allocation5], 4
      %s29 = int_to_ptr.vmem [resolvable:$true] %s28
      %34 = dma.hbm_to_vmem [thread:$0]  %s1, 384, %s29, [#allocation6], 64, 64, 4
    $region9: #{tpu_custom_call.1} parent=1 // pred_fallthru
      _
    // Predicated region
    $region10: #{tpu_custom_call.1} parent=1 // pred_check
      _
    $region11: #{tpu_custom_call.1} parent=1 // pred_check_branch
      %36 = sbr.rel (0) target = $region13
    $region12: #{tpu_custom_call.1} parent=1 // pred_region
      %s38 = ssub.s32 128, 128
      %39 = vsyncadd [#allocation6], %s38
      %s41 = sshll.u32 [#allocation7], 4
      %s42 = int_to_ptr.vmem [resolvable:$true] %s41
      %44 = dma.hbm_to_vmem [thread:$0]  %s2, 128, %s42, [#allocation6]
    $region13: #{tpu_custom_call.1} parent=1 // pred_fallthru
      _
    // Predicated region
    $region14: #{tpu_custom_call.1} parent=1 // pred_check
      _
    $region15: #{tpu_custom_call.1} parent=1 // pred_check_branch
      %46 = sbr.rel (0) target = $region17
    $region16: #{tpu_custom_call.1} parent=1 // pred_region
      %47 = dma.done [#allocation3], 768
    $region17: #{tpu_custom_call.1} parent=1 // pred_fallthru
      _
    // Predicated region
    $region18: #{tpu_custom_call.1} parent=1 // pred_check
      _
    $region19: #{tpu_custom_call.1} parent=1 // pred_check_branch
      %49 = sbr.rel (0) target = $region21
    $region20: #{tpu_custom_call.1} parent=1 // pred_region
      %50 = dma.done [#allocation6], 384
    $region21: #{tpu_custom_call.1} parent=1 // pred_fallthru
      _
    // Predicated region
    $region22: #{tpu_custom_call.1} parent=1 // pred_check
      _
    $region23: #{tpu_custom_call.1} parent=1 // pred_check_branch
      %52 = sbr.rel (0) target = $region25
    $region24: #{tpu_custom_call.1} parent=1 // pred_region
      %53 = dma.done [#allocation6], 128
    $region25: #{tpu_custom_call.1} parent=1 // pred_fallthru
      _
    %v55 = vld [vmem:[#allocation2] sm:$0xff]
    %v56 = vld [vmem:[#allocation2 + $0x8] sm:$0xff]
    %v57 = vld [vmem:[#allocation2 + $0x10] sm:$0xff]
    %v58 = vld [vmem:[#allocation2 + $0x18] sm:$0xff]
    %v59 = vld [vmem:[#allocation2 + $0x20] sm:$0xff]
    %v60 = vld [vmem:[#allocation2 + $0x28] sm:$0xff]
    %v61 = vld [vmem:[#allocation7] sm:$0xff]
    %vm62 = vcmask 392192
    %v64 = vsel %vm62, %v61, 0
    %66 = vmatprep.subr.mxu0 0.0
    %67 = vmatpush1.msra.mxu0 0.0
    %68 = vmatprep.subr.mxu0 0.0
    %69 = vmatpush1.msra.mxu0 0.0
    %70 = vmatprep.subr.mxu0 0.0
    %71 = vmatpush1.msra.mxu0 0.0
    %72 = vmatprep.subr.mxu0 0.0
    %73 = vmatpush1.msra.mxu0 0.0
    %74 = vmatprep.subr.mxu0 0.0
    %75 = vmatpush1.msra.mxu0 0.0
    %76 = vmatprep.subr.mxu0 0.0
    %77 = vmatpush1.msra.mxu0 0.0
    %78 = vmatprep.subr.mxu0 0.0
    %79 = vmatpush1.msra.mxu0 0.0
    %80 = vmatprep.subr.mxu0 0.0
    %81 = vmatpush1.msra.mxu0 0.0
    %82 = vmatprep.subr.mxu0 0.0
    %83 = vmatpush1.msra.mxu0 0.0
    %84 = vmatprep.subr.mxu0 0.0
    %85 = vmatpush1.msra.mxu0 0.0
    %86 = vmatprep.subr.mxu0 0.0
    %87 = vmatpush1.msra.mxu0 %v60
    %88 = vmatprep.subr.mxu0 0.0
    %89 = vmatpush1.msra.mxu0 %v59
    %90 = vmatprep.subr.mxu0 0.0
    %91 = vmatpush1.msra.mxu0 %v58
    %92 = vmatprep.subr.mxu0 0.0
    %93 = vmatpush1.msra.mxu0 %v57
    %94 = vmatprep.subr.mxu0 0.0
    %95 = vmatpush1.msra.mxu0 %v56
    %96 = vmatprep.subr.mxu0 0.0
    %97 = vmatpush1.msra.mxu0 %v55
    %98 = vmatprep.subr.mxu0 0.0
    %99 = vmatpush2.msra.mxu0 0.0
    %100 = vmatprep.subr.mxu0 0.0
    %101 = vmatpush2.msra.mxu0 0.0
    %102 = vmatprep.subr.mxu0 0.0
    %103 = vmatpush2.msra.mxu0 0.0
    %104 = vmatprep.subr.mxu0 0.0
    %105 = vmatpush2.msra.mxu0 0.0
    %106 = vmatprep.subr.mxu0 0.0
    %107 = vmatpush2.msra.mxu0 0.0
    %108 = vmatprep.subr.mxu0 0.0
    %109 = vmatpush2.msra.mxu0 0.0
    %110 = vmatprep.subr.mxu0 0.0
    %111 = vmatpush2.msra.mxu0 0.0
    %112 = vmatprep.subr.mxu0 0.0
    %113 = vmatpush2.msra.mxu0 0.0
    %114 = vmatprep.subr.mxu0 0.0
    %115 = vmatpush2.msra.mxu0 0.0
    %116 = vmatprep.subr.mxu0 0.0
    %117 = vmatpush2.msra.mxu0 0.0
    %118 = vmatprep.subr.mxu0 0.0
    %119 = vmatpush2.msra.mxu0 0.0
    %120 = vmatprep.subr.mxu0 0.0
    %121 = vmatpush2.msra.mxu0 0.0
    %122 = vmatprep.subr.mxu0 0.0
    %123 = vmatpush2.msra.mxu0 0.0
    %124 = vmatprep.subr.mxu0 0.0
    %125 = vmatpush2.msra.mxu0 0.0
    %126 = vmatprep.subr.mxu0 0.0
    %127 = vmatpush2.msra.mxu0 0.0
    %128 = vmatprep.subr.mxu0 0.0
    %129 = vmatpush2.msra.mxu0 0.0
    %130 = vmatprep.mubr.f32.mxu0 0.0
    %131 = vmatmul.mubr.f32.gmra.mxu0 %v64
    %v132 = vpop.f32.mrf.mxu0
    %v133 = vadd.f32 0.0, %v132
    %v134 = vpop.f32.mrf.mxu0
    %135 = vdwg.mxu0
    %vm136 = vcmp.ge.f32.partialorder %v133, 0.0
    %v137 = vsel %vm136, 1.0, -1.0
    %v139 = vsel %vm62, %v137, 0
    %141 = vmatprep.subr.mxu0 0.0
    %142 = vmatpush1.msra.mxu0 0.0
    %143 = vmatprep.subr.mxu0 0.0
    %144 = vmatpush1.msra.mxu0 0.0
    %145 = vmatprep.subr.mxu0 0.0
    %146 = vmatpush1.msra.mxu0 0.0
    %147 = vmatprep.subr.mxu0 0.0
    %148 = vmatpush1.msra.mxu0 0.0
    %149 = vmatprep.subr.mxu0 0.0
    %150 = vmatpush1.msra.mxu0 0.0
    %151 = vmatprep.subr.mxu0 0.0
    %152 = vmatpush1.msra.mxu0 0.0
    %153 = vmatprep.subr.mxu0 0.0
    %154 = vmatpush1.msra.mxu0 0.0
    %155 = vmatprep.subr.mxu0 0.0
    %156 = vmatpush1.msra.mxu0 0.0
    %157 = vmatprep.subr.mxu0 0.0
    %158 = vmatpush1.msra.mxu0 0.0
    %159 = vmatprep.subr.mxu0 0.0
    %160 = vmatpush1.msra.mxu0 0.0
    %161 = vmatprep.subr.mxu0 0.0
    %162 = vmatpush1.msra.mxu0 %v60
    %163 = vmatprep.subr.mxu0 0.0
    %164 = vmatpush1.msra.mxu0 %v59
    %165 = vmatprep.subr.mxu0 0.0
    %166 = vmatpush1.msra.mxu0 %v58
    %167 = vmatprep.subr.mxu0 0.0
    %168 = vmatpush1.msra.mxu0 %v57
    %169 = vmatprep.subr.mxu0 0.0
    %170 = vmatpush1.msra.mxu0 %v56
    %171 = vmatprep.subr.mxu0 0.0
    %172 = vmatpush1.msra.mxu0 %v55
    %173 = vmatprep.subr.mxu0 0.0
    %174 = vmatpush2.msra.mxu0 0.0
    %175 = vmatprep.subr.mxu0 0.0
    %176 = vmatpush2.msra.mxu0 0.0
    %177 = vmatprep.subr.mxu0 0.0
    %178 = vmatpush2.msra.mxu0 0.0
    %179 = vmatprep.subr.mxu0 0.0
    %180 = vmatpush2.msra.mxu0 0.0
    %181 = vmatprep.subr.mxu0 0.0
    %182 = vmatpush2.msra.mxu0 0.0
    %183 = vmatprep.subr.mxu0 0.0
    %184 = vmatpush2.msra.mxu0 0.0
    %185 = vmatprep.subr.mxu0 0.0
    %186 = vmatpush2.msra.mxu0 0.0
    %187 = vmatprep.subr.mxu0 0.0
    %188 = vmatpush2.msra.mxu0 0.0
    %189 = vmatprep.subr.mxu0 0.0
    %190 = vmatpush2.msra.mxu0 0.0
    %191 = vmatprep.subr.mxu0 0.0
    %192 = vmatpush2.msra.mxu0 0.0
    %193 = vmatprep.subr.mxu0 0.0
    %194 = vmatpush2.msra.mxu0 0.0
    %195 = vmatprep.subr.mxu0 0.0
    %196 = vmatpush2.msra.mxu0 0.0
    %197 = vmatprep.subr.mxu0 0.0
    %198 = vmatpush2.msra.mxu0 0.0
    %199 = vmatprep.subr.mxu0 0.0
    %200 = vmatpush2.msra.mxu0 0.0
    %201 = vmatprep.subr.mxu0 0.0
    %202 = vmatpush2.msra.mxu0 0.0
    %203 = vmatprep.subr.mxu0 0.0
    %204 = vmatpush2.msra.mxu0 0.0
    %205 = vmatprep.mubr.f32.mxu0 0.0
    %206 = vmatmul.mubr.f32.gmra.mxu0 %v139
    %v207 = vpop.f32.mrf.mxu0
    %v208 = vadd.f32 0.0, %v207
    %v209 = vpop.f32.mrf.mxu0
    %210 = vdwg.mxu0
    %vm211 = vcmp.ge.f32.partialorder %v208, 0.0
    %v212 = vsel %vm211, 1.0, -1.0
    %v214 = vsel %vm62, %v212, 0
    %216 = vmatprep.subr.mxu0 0.0
    %217 = vmatpush1.msra.mxu0 0.0
    %218 = vmatprep.subr.mxu0 0.0
    %219 = vmatpush1.msra.mxu0 0.0
    %220 = vmatprep.subr.mxu0 0.0
    %221 = vmatpush1.msra.mxu0 0.0
    %222 = vmatprep.subr.mxu0 0.0
    %223 = vmatpush1.msra.mxu0 0.0
    %224 = vmatprep.subr.mxu0 0.0
    %225 = vmatpush1.msra.mxu0 0.0
    %226 = vmatprep.subr.mxu0 0.0
    %227 = vmatpush1.msra.mxu0 0.0
    %228 = vmatprep.subr.mxu0 0.0
    %229 = vmatpush1.msra.mxu0 0.0
    %230 = vmatprep.subr.mxu0 0.0
    %231 = vmatpush1.msra.mxu0 0.0
    %232 = vmatprep.subr.mxu0 0.0
    %233 = vmatpush1.msra.mxu0 0.0
    %234 = vmatprep.subr.mxu0 0.0
    %235 = vmatpush1.msra.mxu0 0.0
    %236 = vmatprep.subr.mxu0 0.0
    %237 = vmatpush1.msra.mxu0 %v60
    %238 = vmatprep.subr.mxu0 0.0
    %239 = vmatpush1.msra.mxu0 %v59
    %240 = vmatprep.subr.mxu0 0.0
    %241 = vmatpush1.msra.mxu0 %v58
    %242 = vmatprep.subr.mxu0 0.0
    %243 = vmatpush1.msra.mxu0 %v57
    %244 = vmatprep.subr.mxu0 0.0
    %245 = vmatpush1.msra.mxu0 %v56
    %246 = vmatprep.subr.mxu0 0.0
    %247 = vmatpush1.msra.mxu0 %v55
    %248 = vmatprep.subr.mxu0 0.0
    %249 = vmatpush2.msra.mxu0 0.0
    %250 = vmatprep.subr.mxu0 0.0
    %251 = vmatpush2.msra.mxu0 0.0
    %252 = vmatprep.subr.mxu0 0.0
    %253 = vmatpush2.msra.mxu0 0.0
    %254 = vmatprep.subr.mxu0 0.0
    %255 = vmatpush2.msra.mxu0 0.0
    %256 = vmatprep.subr.mxu0 0.0
    %257 = vmatpush2.msra.mxu0 0.0
    %258 = vmatprep.subr.mxu0 0.0
    %259 = vmatpush2.msra.mxu0 0.0
    %260 = vmatprep.subr.mxu0 0.0
    %261 = vmatpush2.msra.mxu0 0.0
    %262 = vmatprep.subr.mxu0 0.0
    %263 = vmatpush2.msra.mxu0 0.0
    %264 = vmatprep.subr.mxu0 0.0
    %265 = vmatpush2.msra.mxu0 0.0
    %266 = vmatprep.subr.mxu0 0.0
    %267 = vmatpush2.msra.mxu0 0.0
    %268 = vmatprep.subr.mxu0 0.0
    %269 = vmatpush2.msra.mxu0 0.0
    %270 = vmatprep.subr.mxu0 0.0
    %271 = vmatpush2.msra.mxu0 0.0
    %272 = vmatprep.subr.mxu0 0.0
    %273 = vmatpush2.msra.mxu0 0.0
    %274 = vmatprep.subr.mxu0 0.0
    %275 = vmatpush2.msra.mxu0 0.0
    %276 = vmatprep.subr.mxu0 0.0
    %277 = vmatpush2.msra.mxu0 0.0
    %278 = vmatprep.subr.mxu0 0.0
    %279 = vmatpush2.msra.mxu0 0.0
    %280 = vmatprep.mubr.f32.mxu0 0.0
    %281 = vmatmul.mubr.f32.gmra.mxu0 %v214
    %v282 = vpop.f32.mrf.mxu0
    %v283 = vadd.f32 0.0, %v282
    %v284 = vpop.f32.mrf.mxu0
    %285 = vdwg.mxu0
    %vm286 = vcmp.ge.f32.partialorder %v283, 0.0
    %v287 = vsel %vm286, 1.0, -1.0
    %v288 = vpack.c.bf16 %v287, %v287
    %v289 = vld [vmem:[#allocation5] sm:$0xf]
    %v290 = vld [vmem:[#allocation5 + $0x4] sm:$0xf]
    %v291 = vld [vmem:[#allocation5 + $0x8] sm:$0xf]
    %v292 = vld [vmem:[#allocation5 + $0xc] sm:$0xf]
    %v293 = vld [vmem:[#allocation5 + $0x10] sm:$0xf]
    %v294 = vld [vmem:[#allocation5 + $0x14] sm:$0xf]
    %v301 = vunpack.c.l.b16 %v289
    %v302 = vunpack.c.l.b16 %v290
    %v303 = vunpack.c.l.b16 %v291
    %v304 = vunpack.c.l.b16 %v292
    %v305 = vunpack.c.l.b16 %v293
    %v306 = vunpack.c.l.b16 %v294
    %v307 = vpack.c.b16 %v302, %v301
    %v308 = vpack.c.b16 %v304, %v303
    %v309 = vpack.c.b16 %v306, %v305
    %v314 = vsel %vm62, %v288, 0
    %316 = vmatprep.subr.bf16.mxu0 0
    %317 = vmatpush1.bf16.msra.mxu0 0
    %318 = vmatprep.subr.bf16.mxu0 0
    %319 = vmatpush1.bf16.msra.mxu0 0
    %320 = vmatprep.subr.bf16.mxu0 0
    %321 = vmatpush1.bf16.msra.mxu0 0
    %322 = vmatprep.subr.bf16.mxu0 0
    %323 = vmatpush1.bf16.msra.mxu0 0
    %324 = vmatprep.subr.bf16.mxu0 0
    %325 = vmatpush1.bf16.msra.mxu0 0
    %326 = vmatprep.subr.bf16.mxu0 0
    %327 = vmatpush1.bf16.msra.mxu0 %v309
    %328 = vmatprep.subr.bf16.mxu0 0
    %329 = vmatpush1.bf16.msra.mxu0 %v308
    %330 = vmatprep.subr.bf16.mxu0 0
    %331 = vmatpush1.bf16.msra.mxu0 %v307
    %332 = vmatprep.subr.bf16.mxu0 0
    %333 = vmatpush2.bf16.msra.mxu0 0
    %334 = vmatprep.subr.bf16.mxu0 0
    %335 = vmatpush2.bf16.msra.mxu0 0
    %336 = vmatprep.subr.bf16.mxu0 0
    %337 = vmatpush2.bf16.msra.mxu0 0
    %338 = vmatprep.subr.bf16.mxu0 0
    %339 = vmatpush2.bf16.msra.mxu0 0
    %340 = vmatprep.subr.bf16.mxu0 0
    %341 = vmatpush2.bf16.msra.mxu0 0
    %342 = vmatprep.subr.bf16.mxu0 0
    %343 = vmatpush2.bf16.msra.mxu0 0
    %344 = vmatprep.subr.bf16.mxu0 0
    %345 = vmatpush2.bf16.msra.mxu0 0
    %346 = vmatprep.subr.bf16.mxu0 0
    %347 = vmatpush2.bf16.msra.mxu0 0
    %348 = vmatprep.mubr.bf16.mxu0 0
    %349 = vmatmul.mubr.bf16.gmra.mxu0 %v314
    %v350 = vpop.f32.mrf.mxu0
    %v351 = vadd.f32 0.0, %v350
    %v352 = vpop.f32.mrf.mxu0
    %v353 = vpop.f32.mrf.mxu0
    %v354 = vpop.f32.mrf.mxu0
    %355 = vdwg.mxu0
    %v356 = vand.u32 2147483647, %v351
    %v357 = vpack.c.bf16 %v356, %v356
    %358 = vst [vmem:[#allocation8] sm:$0xf] %v357
    // Predicated region
    $region26: #{tpu_custom_call.1} parent=1 // pred_check
      _
    $region27: #{tpu_custom_call.1} parent=1 // pred_check_branch
      %360 = sbr.rel (0) target = $region29
    $region28: #{tpu_custom_call.1} parent=1 // pred_region
      %s362 = ssub.s32 64, 64
      %363 = vsyncadd [#allocation4], %s362
      %s365 = sshll.u32 [#allocation8], 4
      %s366 = int_to_ptr.vmem [resolvable:$true] %s365
      %368 = dma.vmem_to_hbm [thread:$0]  %s366, 64, %s3, [#allocation4]
    $region29: #{tpu_custom_call.1} parent=1 // pred_fallthru
      _
    // Predicated region
    $region30: #{tpu_custom_call.1} parent=1 // pred_check
      _
    $region31: #{tpu_custom_call.1} parent=1 // pred_check_branch
      %370 = sbr.rel (0) target = $region33
    $region32: #{tpu_custom_call.1} parent=1 // pred_region
      %371 = dma.done [#allocation4], 64
    $region33: #{tpu_custom_call.1} parent=1 // pred_fallthru
      _
    %372 = vsyncpa [#allocation3], 1
    %373 = vsyncpa [#allocation6], 1
    %374 = vsyncpa [#allocation4], 1

</llo_original>
